<compile_context>
chip_gen: v5e
topology: v5e:2x2
jax: 0.10.0
libtpu: 0.0.40
codegen_flags: <defaults>
</compile_context>

<pallas_src>
import functools

import jax
import jax.numpy as jnp
from jax.experimental import pallas as pl
from jax.experimental.pallas import tpu as pltpu

IN_FEATURES = 10
OUT_FEATURES = 1


def linear_kernel(x_t_ref, w_ref, b_ref, o_ref):
    # x_t_ref: (IN, TB)  -- batch on the lane axis (lane-dense)
    # w_ref:   (IN, 1)   -- weight column, VMEM-resident across grid steps
    # b_ref:   (1, 1)    -- bias scalar in SMEM
    # o_ref:   (1, TB)   -- lane-dense output tile
    x_t = x_t_ref[...]
    w = w_ref[...]                               # (IN, 1) broadcasts over lanes
    y = jnp.sum(x_t * w, axis=0, keepdims=True)  # VPU mul + small sublane reduce
    o_ref[...] = y + b_ref[0, 0]                 # scalar bias epilogue


def _round_up(n, m):
    return ((n + m - 1) // m) * m


def _pick_tile(batch, tile_b, min_grid_steps):
    """Lane tile: multiple of 128, <= tile_b, sized so the grid has several steps."""
    batch = max(int(batch), 1)
    max_tile = _round_up(min(int(tile_b), batch), 128)
    # Aim for at least `min_grid_steps` grid steps (overlap + v7x megacore),
    # but never drop below 512 lanes per step unless the batch itself is smaller.
    per_step = _round_up(pl.cdiv(batch, max(int(min_grid_steps), 1)), 128)
    tb = min(max_tile, max(per_step, 512))
    return max(tb, 128)


def _linear_feature_major(x_t, weight, bias, *, tile_b, min_grid_steps):
    """y_t = W @ x_t + b for x_t of shape (IN, B); returns (OUT, B)."""
    in_f, batch = x_t.shape
    assert in_f == IN_FEATURES, f"expected {IN_FEATURES} features, got {in_f}"

    tb = _pick_tile(batch, tile_b, min_grid_steps)
    grid = (pl.cdiv(batch, tb),)

    w_col = weight.reshape(OUT_FEATURES, IN_FEATURES).T.astype(jnp.float32)  # (IN, OUT)
    b_smem = bias.reshape(1, 1).astype(jnp.float32)                          # (1, 1)

    return pl.pallas_call(
        linear_kernel,
        out_shape=jax.ShapeDtypeStruct((OUT_FEATURES, batch), jnp.float32),
        grid=grid,
        in_specs=[
            pl.BlockSpec((IN_FEATURES, tb), lambda i: (0, i)),
            pl.BlockSpec((IN_FEATURES, OUT_FEATURES), lambda i: (0, 0)),
            pl.BlockSpec(memory_space=pltpu.MemorySpace.SMEM),
        ],
        out_specs=pl.BlockSpec((OUT_FEATURES, tb), lambda i: (0, i)),
        compiler_params=pltpu.CompilerParams(
            dimension_semantics=("parallel",),
            # Let XLA fuse the producer of x_t (e.g. the wrapper transpose)
            # directly into the pallas operand instead of materializing it.
            allow_input_fusion=[True, False, False],
        ),
    )(x_t, w_col, b_smem)


@functools.partial(jax.jit, static_argnames=("tile_b", "min_grid_steps"))
def simple_model_forward_feature_major(x_t, weight, bias, *, tile_b=32768,
                                       min_grid_steps=4):
    """Preferred entry: x_t is (IN, B) feature-major; returns (OUT, B).

    Zero extra HBM passes over x (no pad, no transpose)."""
    return _linear_feature_major(
        x_t, weight, bias, tile_b=tile_b, min_grid_steps=min_grid_steps)


@functools.partial(jax.jit, static_argnames=("tile_b", "min_grid_steps"))
def simple_model_forward(x, weight, bias, *, tile_b=32768, min_grid_steps=4):
    """y = x @ W^T + b  (torch.nn.Linear(10, 1) forward).

    x: (B, 10) f32, weight: (1, 10) f32 (PyTorch layout), bias: (1,) f32.
    Returns (B, 1) f32.
    """
    # Layout plumbing only; with allow_input_fusion the transpose can be fused
    # into the pallas operand rather than materialized in HBM.
    y_t = _linear_feature_major(
        x.T, weight, bias, tile_b=tile_b, min_grid_steps=min_grid_steps)
    return y_t.T                                                  # (B, OUT)


def init_params(key):
    """Deterministic init mimicking torch.nn.Linear default
    (uniform(-1/sqrt(fan_in), 1/sqrt(fan_in)))."""
    kw, kb = jax.random.split(key)
    bound = 1.0 / jnp.sqrt(jnp.float32(IN_FEATURES))
    weight = jax.random.uniform(
        kw, (OUT_FEATURES, IN_FEATURES), jnp.float32, minval=-bound, maxval=bound
    )
    bias = jax.random.uniform(
        kb, (OUT_FEATURES,), jnp.float32, minval=-bound, maxval=bound
    )
    return weight, bias


if __name__ == "__main__":
    key = jax.random.PRNGKey(0)
    kparam, kx = jax.random.split(key)
    weight, bias = init_params(kparam)

    batch = 8                     # small demo; also exercises the ragged block path
    x = jax.random.normal(kx, (batch, IN_FEATURES), jnp.float32)

    y = simple_model_forward(x, weight, bias)
    y = jax.block_until_ready(y)

    # Feature-major entry (preferred contract, no extra HBM pass over x).
    y_fm = simple_model_forward_feature_major(x.T, weight, bias)
    y_fm = jax.block_until_ready(y_fm)

    # Sanity check against plain-JAX reference.
    y_ref = x @ weight.T + bias
    assert y.shape == (batch, OUT_FEATURES)
    assert jnp.allclose(y, y_ref, atol=1e-5, rtol=1e-5)
    assert jnp.allclose(y_fm.T, y_ref, atol=1e-5, rtol=1e-5)

    print("KERNEL_OK")
</pallas_src>

<mosaic_0001>
module attributes {stable_mosaic.version = 11 : i64} {
  func.func @linear_kernel(%arg0: i32, %arg1: memref<10x128xf32, #tpu.memory_space<vmem>>, %arg2: memref<10x1xf32, #tpu.memory_space<vmem>>, %arg3: memref<1x1xf32, #tpu.memory_space<smem>>, %arg4: memref<1x128xf32, #tpu.memory_space<vmem>>) attributes {dimension_semantics = [#tpu.dimension_semantics<parallel>], iteration_bounds = array<i64: 1>, scalar_prefetch = 0 : i64, scratch_operands = 0 : i64, tpu.core_type = #tpu.core_type<tc>, window_params = [{transform_indices = @transform_0, window_bounds = array<i64: 10, 128>}, {pipeline_mode = #tpu.pipeline_mode<synchronous>, transform_indices = @transform_1, window_bounds = array<i64: 10, 1>}, {transform_indices = @transform_2, window_bounds = array<i64: 1, 1>}, {transform_indices = @transform_3, window_bounds = array<i64: 1, 128>}]} {
    %c0 = arith.constant 0 : index
    %c0_0 = arith.constant 0 : index
    %0 = vector.load %arg1[%c0, %c0_0] : memref<10x128xf32, #tpu.memory_space<vmem>>, vector<10x128xf32>
    %c0_1 = arith.constant 0 : index
    %c0_2 = arith.constant 0 : index
    %1 = vector.load %arg2[%c0_1, %c0_2] : memref<10x1xf32, #tpu.memory_space<vmem>>, vector<10x1xf32>
    %2 = vector.broadcast %1 : vector<10x1xf32> to vector<10x128xf32>
    %3 = arith.mulf %0, %2 : vector<10x128xf32>
    %cst = arith.constant dense<0.000000e+00> : vector<128xf32>
    %4 = vector.multi_reduction <add>, %3, %cst [0] : vector<10x128xf32> to vector<128xf32>
    %5 = vector.shape_cast %4 : vector<128xf32> to vector<1x128xf32>
    %c0_3 = arith.constant 0 : index
    %c0_4 = arith.constant 0 : index
    %6 = memref.load %arg3[%c0_3, %c0_4] : memref<1x1xf32, #tpu.memory_space<smem>>
    %7 = vector.broadcast %6 : f32 to vector<1x128xf32>
    %8 = arith.addf %5, %7 : vector<1x128xf32>
    %c0_5 = arith.constant 0 : index
    %c0_6 = arith.constant 0 : index
    %9 = vector.load %arg4[%c0_5, %c0_6] : memref<1x128xf32, #tpu.memory_space<vmem>>, vector<1x128xf32>
    tpu.vector_store %arg4[%c0_5, %c0_6], %8 {strides = array<i32>} : memref<1x128xf32, #tpu.memory_space<vmem>>, vector<1x128xf32>,
    return
  }
  func.func @transform_0(%arg0: i32) -> (i32, i32) {
    %c0_i32 = arith.constant 0 : i32
    %c0_i32_0 = arith.constant 0 : i32
    return %c0_i32, %arg0 : i32, i32
  }
  func.func @transform_1(%arg0: i32) -> (i32, i32) {
    %c0_i32 = arith.constant 0 : i32
    %c0_i32_0 = arith.constant 0 : i32
    %c0_i32_1 = arith.constant 0 : i32
    return %c0_i32, %c0_i32_0 : i32, i32
  }
  func.func @transform_2(%arg0: i32) -> (i32, i32) {
    %c0_i32 = arith.constant 0 : i32
    %c0_i32_0 = arith.constant 0 : i32
    %c0_i32_1 = arith.constant 0 : i32
    return %c0_i32, %c0_i32_0 : i32, i32
  }
  func.func @transform_3(%arg0: i32) -> (i32, i32) {
    %c0_i32 = arith.constant 0 : i32
    %c0_i32_0 = arith.constant 0 : i32
    return %c0_i32, %arg0 : i32, i32
  }
}

</mosaic_0001>

<llo_original>
// kernel: simple_model_forward.2
$region0: #{simple_model_forward.2}
  #allocation0 [shape = 'u32[]', space=smem, size = 0x4, offset = 0x4, fixed_abs, tag = 'smem constant byte address 0x4 - core index']
  #allocation1 [shape = 'u32[72,128]{1,0:T(1,128)}', space=vmem, size = 0x9000, scoped, tag = 'internal scratch']
  #allocation2 [shape = 'f32[1,1]{1,0:T(1,128)S(6)}', space=smem, size = 0x200, scoped, tag = 'scoped memory for simple_model_forward.2']
  %s0 = inlined_call_operand.vmem [shape: f32[10,1], index: 0, kind: input, shape index: {}]
  %s1 = inlined_call_operand.<no memory space> [shape: f32[1,1], index: 1, kind: input, shape index: {}]
  %s2 = inlined_call_operand.vmem [shape: f32[8,10], index: 2, kind: input, shape index: {}]
  %s3 = inlined_call_operand.hbm [shape: f32[1,8], index: 3, kind: output, shape index: {}]
  %s4 = sld [smem:[#allocation0]]
  $region22: #{simple_model_forward.2} parent=0
    _
  %s6 = ssub.s32 1, %s4
  %s7 = scalar_select 0, %s6, %s4
  %8 = sst [smem:[#allocation2]] %s1
  $region1: #{simple_model_forward.2} parent=0
    #allocation3 [shape = 'u8[512]{0}', space=vmem, size = 0x400, scoped, tag = 'output window, operand 0, single buffered']
    #allocation4 [shape = 's32[1]{0}', space=sflag, size = 0x4, scoped, tag = 'scoped memory for simple_model_forward.2']
    #allocation5 [shape = 'u8[8192]{0}', space=vmem, size = 0x2000, dematerialized = true, scoped, tag = 'FusionAdapter Buffer %fusion.1 = f32[10,8]{1,0:T(8,128)} fusion(%param_2.1), kind=kLoop, calls=%fused_computation.1.clone, metadata={op_name="jit(simple_model_forward)/transpose" stack_frame_id=7}']
    %9 = vsyncpa [#allocation4], 0
    // Predicated region
    $region2: #{simple_model_forward.2} parent=1 // pred_check
      _
    $region3: #{simple_model_forward.2} parent=1 // pred_check_branch
      %11 = sbr.rel (0) target = $region5
    $region4: #{simple_model_forward.2} parent=1 // pred_region
      _
    $region5: #{simple_model_forward.2} parent=1 // pred_fallthru
      _
    // Predicated region
    $region6: #{simple_model_forward.2} parent=1 // pred_check
      _
    $region7: #{simple_model_forward.2} parent=1 // pred_check_branch
      %13 = sbr.rel (0) target = $region9
    $region8: #{simple_model_forward.2} parent=1 // pred_region
      _
    $region9: #{simple_model_forward.2} parent=1 // pred_fallthru
      _
    // Predicated region
    $region10: #{simple_model_forward.2} parent=1 // pred_check
      _
    $region11: #{simple_model_forward.2} parent=1 // pred_check_branch
      %15 = sbr.rel (0) target = $region13
    $region12: #{simple_model_forward.2} parent=1 // pred_region
      _
    $region13: #{simple_model_forward.2} parent=1 // pred_fallthru
      _
    %v16 = vld [vmem:[%s2] sm:$0xff]
    %s18 = ssub.s32 256, 1
    %19 = vst [vmem:[#allocation5] sm:%s18] %v16
    %s20 = scalar_lea.vmem %s2, 8
    %v21 = vld [vmem:[%s20] sm:$0xff]
    %s22 = scalar_lea.vmem [#allocation5], 8
    %s24 = ssub.s32 256, 1
    %25 = vst [vmem:[%s22] sm:%s24] %v21
    %v26 = vld [vmem:[#allocation5] sm:$0xff]
    %v27 = vld [vmem:[#allocation5 + $0x8] sm:$0x3]
    %v28 = vld [vmem:[%s0] sm:$0xff]
    %v29 = vld [vmem:[%s0 + $0x8] sm:$0x3]
    %31 = vset.pattern.permute.xlu0 0
    %32 = vperm.xlu0 %31, %v28
    %v33 = vpop.permute.xlu0 %32
    %36 = vset.pattern.permute.xlu0 0
    %37 = vperm.xlu0 %36, %v29
    %v38 = vpop.permute.xlu0 %37
    %v40 = vmul.f32 %v26, %v33
    %v41 = vmul.f32 %v27, %v38
    %vm42 = vcmask 1041408
    %v43 = vsel %vm42, %v41, 0.0
    %v44 = vadd.f32 %v40, %v43
    %v45 = vrot.slane %v44, 4
    %v46 = vadd.f32 %v44, %v45
    %v47 = vrot.slane %v46, 2
    %v48 = vadd.f32 %v46, %v47
    %v49 = vrot.slane %v48, 1
    %v50 = vadd.f32 %v48, %v49
    %s51 = sld [smem:[#allocation2]]
    %v52 = vstv %s51
    %v53 = vadd.f32 %v50, %v52
    %54 = vst [vmem:[#allocation3] sm:$0x1] %v53
    // Predicated region
    $region14: #{simple_model_forward.2} parent=1 // pred_check
      _
    $region15: #{simple_model_forward.2} parent=1 // pred_check_branch
      %56 = sbr.rel (0) target = $region17
    $region16: #{simple_model_forward.2} parent=1 // pred_region
      %58 = vsyncadd [#allocation4], 0
      %s60 = sshll.u32 [#allocation3], 4
      %s61 = int_to_ptr.vmem [resolvable:$true] %s60
      %s62 = sshll.u32 %s3, 4
      %s63 = int_to_ptr.hbm [resolvable:$true] %s62
      %65 = dma.vmem_to_hbm [thread:$0]  %s61, 16, %s63, [#allocation4]
    $region17: #{simple_model_forward.2} parent=1 // pred_fallthru
      _
    // Predicated region
    $region18: #{simple_model_forward.2} parent=1 // pred_check
      _
    $region19: #{simple_model_forward.2} parent=1 // pred_check_branch
      %67 = sbr.rel (0) target = $region21
    $region20: #{simple_model_forward.2} parent=1 // pred_region
      %69 = dma.done [#allocation4], 16
    $region21: #{simple_model_forward.2} parent=1 // pred_fallthru
      _
    %70 = vsyncpa [#allocation4], 1

</llo_original>
